<compile_context>
chip_gen: v6e
topology: v6e:2x2x1
jax: 0.10.0
libtpu: 0.0.40
codegen_flags: <defaults>
</compile_context>

<pallas_src>
import numpy as np
import jax
import jax.numpy as jnp
from jax.experimental import pallas as pl
from jax.experimental.pallas import tpu as pltpu


# ----------------------------------------------------------------------------
# Host-side helpers
# ----------------------------------------------------------------------------
def make_interp_matrix(n_in: int, n_out: int) -> np.ndarray:
    """Row-interpolation matrix for bilinear upsample with align_corners=True."""
    if n_out == 1:
        src = np.zeros((1,), dtype=np.float64)
    else:
        src = np.arange(n_out, dtype=np.float64) * (n_in - 1) / (n_out - 1)
    i0 = np.clip(np.floor(src).astype(np.int64), 0, n_in - 1)
    i1 = np.minimum(i0 + 1, n_in - 1)
    frac = (src - i0).astype(np.float32)
    A = np.zeros((n_out, n_in), dtype=np.float32)
    A[np.arange(n_out), i0] += 1.0 - frac
    A[np.arange(n_out), i1] += frac
    return A


def _pick_block_n(n: int, per_elem_bytes: int, kron_unit: int,
                  target_bytes: int = 2 << 20, max_nb: int = 256) -> int:
    """Batch elements per grid step.

    - ~target_bytes of streamed (in + out) data per step,
    - keep the quadratic kron(I_Nb, W) weight modest (Nb * max(Cin,Cout) <= 1024),
    - split across >=2 steps only when each batch element is big enough that
      dual-TC sharding (v7x) could actually pay for the extra grid step.
    """
    nb = max(1, min(n, max_nb, target_bytes // max(per_elem_bytes, 1)))
    while nb > 1 and nb * max(kron_unit, 1) > 1024:
        nb = max(1, nb // 2)
    if n >= 2 and per_elem_bytes >= (256 << 10):
        nb = min(nb, (n + 1) // 2)
    return int(nb)


# ----------------------------------------------------------------------------
# Kernel
# ----------------------------------------------------------------------------
def outconv_kernel(x_ref, wbd_ref, at_ref, b_ref, o_ref):
    # x_ref  : (Nb, Cin, HW)        input block, lane-dense (HW on lanes)
    # wbd_ref: (Nb*Cout, Nb*Cin)    block-diagonal 1x1-conv weight kron(I_Nb, W)
    # at_ref : (HW, H2W2)           (A_h (x) A_w)^T bilinear-interp operator
    # b_ref  : (Cout, 1)            conv bias (f32)
    # o_ref  : (Nb, Cout, H2W2)     output block, lane-dense
    nb, cin, hw = x_ref.shape
    cout = b_ref.shape[0]
    h2w2 = at_ref.shape[1]

    # Fold batch into the MXU M dimension (contiguous sublane merge, no relayout).
    x2 = x_ref[...].reshape(nb * cin, hw)

    # 1x1 conv FIRST (conv and bilinear upsample are both linear, so they
    # commute): channel mixing at H x W instead of H2 x W2.
    small = jnp.dot(wbd_ref[...], x2,
                    preferred_element_type=jnp.float32)         # (Nb*Cout, HW)

    # Bilinear 2x upsample (align_corners=True) as one lane-dense MXU matmul.
    up = jnp.dot(small, at_ref[...],
                 preferred_element_type=jnp.float32)            # (Nb*Cout, H2W2)

    out = up.reshape(nb, cout, h2w2) + b_ref[...][None, :, :]   # bias broadcast
    o_ref[...] = out.astype(o_ref.dtype)


# ----------------------------------------------------------------------------
# Wrapper
# ----------------------------------------------------------------------------
def outconv_pallas(x, weight, bias, *, compute_dtype=jnp.float32):
    """Forward of OutConv: y = Conv1x1(Upsample2x_bilinear_align_corners(x)).

    x: (N, Cin, H, W); weight: (Cout, Cin) or (Cout, Cin, 1, 1); bias: (Cout,).
    """
    if weight.ndim == 4:
        weight = weight[:, :, 0, 0]
    N, Cin, H, W = x.shape
    Cout = weight.shape[0]
    H2, W2 = 2 * H, 2 * W
    HW, H2W2 = H * W, H2 * W2

    in_itemsize = jnp.dtype(compute_dtype).itemsize
    out_itemsize = jnp.dtype(x.dtype).itemsize
    per_elem_bytes = Cin * HW * in_itemsize + Cout * H2W2 * out_itemsize
    Nb = _pick_block_n(N, per_elem_bytes, max(Cin, Cout))
    num_blocks = -(-N // Nb)
    N_pad = num_blocks * Nb

    # Lane-dense (flattened-spatial) input; pad batch to a multiple of Nb.
    x3 = x.reshape(N, Cin, HW)
    if N_pad != N:
        x3 = jnp.pad(x3, ((0, N_pad - N), (0, 0), (0, 0)))
    x3 = x3.astype(compute_dtype)

    # Precomputed operators (host-side / tiny).
    A = np.kron(make_interp_matrix(H, H2), make_interp_matrix(W, W2))  # (H2W2, HW)
    A_T = jnp.asarray(A.T, dtype=compute_dtype)                        # (HW, H2W2)
    W_bd = jnp.kron(jnp.eye(Nb, dtype=weight.dtype), weight).astype(compute_dtype)
    b2 = bias.reshape(Cout, 1).astype(jnp.float32)

    # VMEM budget: double-buffered tiles + resident constants, capped for v7x.
    x_blk = Nb * Cin * HW * in_itemsize
    o_blk = Nb * Cout * H2W2 * out_itemsize
    w_blk = (Nb * Cout) * (Nb * Cin) * in_itemsize
    a_blk = HW * H2W2 * in_itemsize
    vmem_est = 2 * (x_blk + o_blk + w_blk + a_blk + Cout * 4) + (2 << 20)
    vmem_limit = int(min(64 << 20, max(16 << 20, vmem_est)))

    flops = (2 * N_pad * Nb * Cout * Cin * HW        # block-diag channel mix
             + 2 * N_pad * Cout * HW * H2W2)         # upsample matmul
    bytes_accessed = int(x3.size * in_itemsize
                         + N_pad * Cout * H2W2 * out_itemsize
                         + A_T.size * in_itemsize
                         + W_bd.size * in_itemsize
                         + b2.size * 4)
    cost = pl.CostEstimate(flops=flops, transcendentals=0,
                           bytes_accessed=bytes_accessed)

    grid_spec = pltpu.PrefetchScalarGridSpec(
        num_scalar_prefetch=0,
        grid=(num_blocks,),
        in_specs=[
            pl.BlockSpec((Nb, Cin, HW), lambda n: (n, 0, 0)),
            pl.BlockSpec((Nb * Cout, Nb * Cin), lambda n: (0, 0)),
            pl.BlockSpec((HW, H2W2), lambda n: (0, 0)),
            pl.BlockSpec((Cout, 1), lambda n: (0, 0)),
        ],
        out_specs=pl.BlockSpec((Nb, Cout, H2W2), lambda n: (n, 0, 0)),
    )

    out = pl.pallas_call(
        outconv_kernel,
        out_shape=jax.ShapeDtypeStruct((N_pad, Cout, H2W2), x.dtype),
        grid_spec=grid_spec,
        compiler_params=pltpu.CompilerParams(
            dimension_semantics=("parallel",),
            vmem_limit_bytes=vmem_limit),
        cost_estimate=cost,
    )(x3, W_bd, A_T, b2)

    # TODO(synk): for very large H*W the dense Kronecker operator should be
    # replaced by a separable (rows-then-cols) pipelined variant.
    return out[:N].reshape(N, Cout, H2, W2)


# ----------------------------------------------------------------------------
# Pure-numpy reference (matches the PyTorch module: upsample THEN 1x1 conv)
# ----------------------------------------------------------------------------
def ref_outconv_numpy(x, weight, bias):
    N, Cin, H, W = x.shape
    H2, W2 = 2 * H, 2 * W
    ys = np.arange(H2) * (H - 1) / (H2 - 1)
    xs = np.arange(W2) * (W - 1) / (W2 - 1)
    y0 = np.floor(ys).astype(int); y1 = np.minimum(y0 + 1, H - 1); fy = ys - y0
    x0 = np.floor(xs).astype(int); x1 = np.minimum(x0 + 1, W - 1); fx = xs - x0
    top = x[:, :, y0, :][:, :, :, x0] * (1 - fx) + x[:, :, y0, :][:, :, :, x1] * fx
    bot = x[:, :, y1, :][:, :, :, x0] * (1 - fx) + x[:, :, y1, :][:, :, :, x1] * fx
    up = top * (1 - fy)[None, None, :, None] + bot * fy[None, None, :, None]
    out = np.einsum('oc,nchw->nohw', weight, up) + bias[None, :, None, None]
    return out.astype(np.float32)


if __name__ == "__main__":
    # OutConv(in_channels=4, out_channels=3) on a small input.
    N, Cin, H, W = 2, 4, 16, 16
    Cout = 3

    key = jax.random.PRNGKey(0)
    kx, kw, kb = jax.random.split(key, 3)
    x = jax.random.normal(kx, (N, Cin, H, W), dtype=jnp.float32)
    # Conv2d(kernel_size=1) weight shape matches PyTorch: (Cout, Cin, 1, 1).
    bound = 1.0 / np.sqrt(Cin)
    weight = jax.random.uniform(kw, (Cout, Cin, 1, 1), minval=-bound, maxval=bound,
                                dtype=jnp.float32)
    bias = jax.random.uniform(kb, (Cout,), minval=-bound, maxval=bound,
                              dtype=jnp.float32)

    out = jax.block_until_ready(outconv_pallas(x, weight, bias))

    ref = ref_outconv_numpy(np.asarray(x), np.asarray(weight)[:, :, 0, 0],
                            np.asarray(bias))
    np.testing.assert_allclose(np.asarray(out), ref, rtol=1e-4, atol=1e-4)

    print("KERNEL_OK")
</pallas_src>

<mosaic_0001>
module attributes {stable_mosaic.version = 11 : i64} {
  func.func @outconv_kernel(%arg0: i32, %arg1: memref<2x4x256xf32, #tpu.memory_space<vmem>>, %arg2: memref<6x8xf32, #tpu.memory_space<vmem>>, %arg3: memref<256x1024xf32, #tpu.memory_space<vmem>>, %arg4: memref<3x1xf32, #tpu.memory_space<vmem>>, %arg5: memref<2x3x1024xf32, #tpu.memory_space<vmem>>) attributes {dimension_semantics = [#tpu.dimension_semantics<parallel>], iteration_bounds = array<i64: 1>, scalar_prefetch = 0 : i64, scratch_operands = 0 : i64, tpu.core_type = #tpu.core_type<tc>, window_params = [{transform_indices = @transform_0, window_bounds = array<i64: 2, 4, 256>}, {pipeline_mode = #tpu.pipeline_mode<synchronous>, transform_indices = @transform_1, window_bounds = array<i64: 6, 8>}, {pipeline_mode = #tpu.pipeline_mode<synchronous>, transform_indices = @transform_2, window_bounds = array<i64: 256, 1024>}, {pipeline_mode = #tpu.pipeline_mode<synchronous>, transform_indices = @transform_3, window_bounds = array<i64: 3, 1>}, {transform_indices = @transform_4, window_bounds = array<i64: 2, 3, 1024>}]} {
    %c0 = arith.constant 0 : index
    %c0_0 = arith.constant 0 : index
    %c0_1 = arith.constant 0 : index
    %0 = vector.load %arg1[%c0, %c0_0, %c0_1] : memref<2x4x256xf32, #tpu.memory_space<vmem>>, vector<2x4x256xf32>
    %1 = vector.shape_cast %0 : vector<2x4x256xf32> to vector<8x256xf32>
    %c0_2 = arith.constant 0 : index
    %c0_3 = arith.constant 0 : index
    %2 = vector.load %arg2[%c0_2, %c0_3] : memref<6x8xf32, #tpu.memory_space<vmem>>, vector<6x8xf32>
    %cst = arith.constant dense<0.000000e+00> : vector<6x256xf32>
    %3 = tpu.matmul %2, %1, %cst {dimension_numbers = #tpu.dot_dimension_numbers<[1], [0], [0], [1], [0, 0, 1, 1], [], []>} : vector<6x8xf32>, vector<8x256xf32>, vector<6x256xf32> -> vector<6x256xf32>
    %c0_4 = arith.constant 0 : index
    %c0_5 = arith.constant 0 : index
    %4 = vector.load %arg3[%c0_4, %c0_5] : memref<256x1024xf32, #tpu.memory_space<vmem>>, vector<256x1024xf32>
    %cst_6 = arith.constant dense<0.000000e+00> : vector<6x1024xf32>
    %5 = tpu.matmul %3, %4, %cst_6 {dimension_numbers = #tpu.dot_dimension_numbers<[1], [0], [0], [1], [0, 0, 1, 1], [], []>} : vector<6x256xf32>, vector<256x1024xf32>, vector<6x1024xf32> -> vector<6x1024xf32>
    %6 = vector.shape_cast %5 : vector<6x1024xf32> to vector<2x3x1024xf32>
    %c0_7 = arith.constant 0 : index
    %c0_8 = arith.constant 0 : index
    %7 = vector.load %arg4[%c0_7, %c0_8] : memref<3x1xf32, #tpu.memory_space<vmem>>, vector<3x1xf32>
    %8 = vector.shape_cast %7 : vector<3x1xf32> to vector<1x3x1xf32>
    %9 = vector.broadcast %8 : vector<1x3x1xf32> to vector<2x3x1024xf32>
    %10 = arith.addf %6, %9 : vector<2x3x1024xf32>
    %c0_9 = arith.constant 0 : index
    %c0_10 = arith.constant 0 : index
    %c0_11 = arith.constant 0 : index
    %11 = vector.load %arg5[%c0_9, %c0_10, %c0_11] : memref<2x3x1024xf32, #tpu.memory_space<vmem>>, vector<2x3x1024xf32>
    tpu.vector_store %arg5[%c0_9, %c0_10, %c0_11], %10 {strides = array<i32>} : memref<2x3x1024xf32, #tpu.memory_space<vmem>>, vector<2x3x1024xf32>,
    return
  }
  func.func @transform_0(%arg0: i32) -> (i32, i32, i32) {
    %c0_i32 = arith.constant 0 : i32
    %c0_i32_0 = arith.constant 0 : i32
    %c0_i32_1 = arith.constant 0 : i32
    return %arg0, %c0_i32, %c0_i32_0 : i32, i32, i32
  }
  func.func @transform_1(%arg0: i32) -> (i32, i32) {
    %c0_i32 = arith.constant 0 : i32
    %c0_i32_0 = arith.constant 0 : i32
    %c0_i32_1 = arith.constant 0 : i32
    return %c0_i32, %c0_i32_0 : i32, i32
  }
  func.func @transform_2(%arg0: i32) -> (i32, i32) {
    %c0_i32 = arith.constant 0 : i32
    %c0_i32_0 = arith.constant 0 : i32
    %c0_i32_1 = arith.constant 0 : i32
    return %c0_i32, %c0_i32_0 : i32, i32
  }
  func.func @transform_3(%arg0: i32) -> (i32, i32) {
    %c0_i32 = arith.constant 0 : i32
    %c0_i32_0 = arith.constant 0 : i32
    %c0_i32_1 = arith.constant 0 : i32
    return %c0_i32, %c0_i32_0 : i32, i32
  }
  func.func @transform_4(%arg0: i32) -> (i32, i32, i32) {
    %c0_i32 = arith.constant 0 : i32
    %c0_i32_0 = arith.constant 0 : i32
    %c0_i32_1 = arith.constant 0 : i32
    return %arg0, %c0_i32, %c0_i32_0 : i32, i32, i32
  }
}

</mosaic_0001>

<llo_original>
// kernel: tpu_custom_call.1
$region0: #{tpu_custom_call.1}
  #allocation0 [shape = 'u32[]', space=smem, size = 0x4, offset = 0x4, fixed_abs, tag = 'smem constant byte address 0x4 - core index']
  #allocation1 [shape = 'u32[144,128]{1,0:T(1,128)}', space=vmem, size = 0x12000, scoped, tag = 'internal scratch']
  %s0 = inlined_call_operand.hbm [shape: f32[2,4,256], index: 0, kind: input, shape index: {}]
  %s1 = inlined_call_operand.hbm [shape: f32[6,8], index: 1, kind: input, shape index: {}]
  %s2 = inlined_call_operand.hbm [shape: f32[256,1024], index: 2, kind: input, shape index: {}]
  %s3 = inlined_call_operand.vmem [shape: f32[3,1], index: 3, kind: input, shape index: {}]
  %s4 = inlined_call_operand.vmem [shape: f32[2,3,1024], index: 4, kind: output, shape index: {}]
  %s5 = sld [smem:[#allocation0]]
  $region38: #{tpu_custom_call.1} parent=0
    _
  %s7 = ssub.s32 1, %s5
  %s8 = scalar_select 0, %s7, %s5
  $region1: #{tpu_custom_call.1} parent=0
    #allocation2 [shape = 'u8[8192]{0}', space=vmem, size = 0x2000, scoped, tag = 'input window, operand 0, single buffered']
    #allocation3 [shape = 's32[1]{0}', space=sflag, size = 0x4, scoped, tag = 'scoped memory for tpu_custom_call.1']
    #allocation4 [shape = 'u8[4096]{0}', space=vmem, size = 0x1000, scoped, tag = 'input window, operand 1, single buffered']
    #allocation5 [shape = 's32[1]{0}', space=sflag, size = 0x4, scoped, tag = 'scoped memory for tpu_custom_call.1']
    #allocation6 [shape = 'u8[1048576]{0}', space=vmem, size = 0x100000, scoped, tag = 'input window, operand 2, single buffered']
    %9 = vsyncpa [#allocation3], 0
    %10 = vsyncpa [#allocation5], 0
    // Predicated region
    $region2: #{tpu_custom_call.1} parent=1 // pred_check
      _
    $region3: #{tpu_custom_call.1} parent=1 // pred_check_branch
      %12 = sbr.rel (0) target = $region5
    $region4: #{tpu_custom_call.1} parent=1 // pred_region
      %s14 = ssub.s32 256, 256
      %15 = vsyncadd [#allocation3], %s14
      %s16 = sshll.u32 [#allocation2], 4
      %s17 = int_to_ptr.vmem [resolvable:$true] %s16
      %22 = dma.hbm_to_vmem [thread:$0]  %s0, 256, %s17, [#allocation3], 128, 128, 8
    $region5: #{tpu_custom_call.1} parent=1 // pred_fallthru
      _
    // Predicated region
    $region6: #{tpu_custom_call.1} parent=1 // pred_check
      _
    $region7: #{tpu_custom_call.1} parent=1 // pred_check_branch
      %24 = sbr.rel (0) target = $region9
    $region8: #{tpu_custom_call.1} parent=1 // pred_region
      %s26 = ssub.s32 128, 128
      %27 = vsyncadd [#allocation5], %s26
      %s29 = sshll.u32 [#allocation4], 4
      %s30 = int_to_ptr.vmem [resolvable:$true] %s29
      %32 = dma.hbm_to_vmem [thread:$0]  %s1, 128, %s30, [#allocation5]
    $region9: #{tpu_custom_call.1} parent=1 // pred_fallthru
      _
    // Predicated region
    $region10: #{tpu_custom_call.1} parent=1 // pred_check
      _
    $region11: #{tpu_custom_call.1} parent=1 // pred_check_branch
      %34 = sbr.rel (0) target = $region13
    $region12: #{tpu_custom_call.1} parent=1 // pred_region
      %s36 = ssub.s32 32768, 32768
      %37 = vsyncadd [#allocation5], %s36
      %s38 = sshll.u32 [#allocation6], 4
      %s39 = int_to_ptr.vmem [resolvable:$true] %s38
      %44 = dma.hbm_to_vmem [thread:$0]  %s2, 32768, %s39, [#allocation5], 1024, 1024, 64
    $region13: #{tpu_custom_call.1} parent=1 // pred_fallthru
      _
    // Predicated region
    $region14: #{tpu_custom_call.1} parent=1 // pred_check
      _
    $region15: #{tpu_custom_call.1} parent=1 // pred_check_branch
      %46 = sbr.rel (0) target = $region17
    $region16: #{tpu_custom_call.1} parent=1 // pred_region
      _
    $region17: #{tpu_custom_call.1} parent=1 // pred_fallthru
      _
    // Predicated region
    $region18: #{tpu_custom_call.1} parent=1 // pred_check
      _
    $region19: #{tpu_custom_call.1} parent=1 // pred_check_branch
      %48 = sbr.rel (0) target = $region21
    $region20: #{tpu_custom_call.1} parent=1 // pred_region
      %49 = dma.done [#allocation3], 256
    $region21: #{tpu_custom_call.1} parent=1 // pred_fallthru
      _
    // Predicated region
    $region22: #{tpu_custom_call.1} parent=1 // pred_check
      _
    $region23: #{tpu_custom_call.1} parent=1 // pred_check_branch
      %51 = sbr.rel (0) target = $region25
    $region24: #{tpu_custom_call.1} parent=1 // pred_region
      %52 = dma.done [#allocation5], 128
    $region25: #{tpu_custom_call.1} parent=1 // pred_fallthru
      _
    // Predicated region
    $region26: #{tpu_custom_call.1} parent=1 // pred_check
      _
    $region27: #{tpu_custom_call.1} parent=1 // pred_check_branch
      %54 = sbr.rel (0) target = $region29
    $region28: #{tpu_custom_call.1} parent=1 // pred_region
      %55 = dma.done [#allocation5], 32768
    $region29: #{tpu_custom_call.1} parent=1 // pred_fallthru
      _
    %v56 = vld [vmem:[#allocation2] sm:$0xff]
    %v57 = vld [vmem:[#allocation2 + $0x8] sm:$0xff]
    %v58 = vld [vmem:[#allocation4] sm:$0x3f]
    %v61 = vcombine.low %v56, %v57
    %v62 = vcombine.high %v56, %v57
    %vm65 = vcmask 64512
    %v67 = vsel %vm65, %v58, 0
    %69 = vmatprep.subr.mxu0 0.0
    %70 = vmatpush1.msra.mxu0 0.0
    %71 = vmatprep.subr.mxu0 0.0
    %72 = vmatpush1.msra.mxu0 0.0
    %73 = vmatprep.subr.mxu0 0.0
    %74 = vmatpush1.msra.mxu0 0.0
    %75 = vmatprep.subr.mxu0 0.0
    %76 = vmatpush1.msra.mxu0 0.0
    %77 = vmatprep.subr.mxu0 0.0
    %78 = vmatpush1.msra.mxu0 0.0
    %79 = vmatprep.subr.mxu0 0.0
    %80 = vmatpush1.msra.mxu0 0.0
    %81 = vmatprep.subr.mxu0 0.0
    %82 = vmatpush1.msra.mxu0 0.0
    %83 = vmatprep.subr.mxu0 0.0
    %84 = vmatpush1.msra.mxu0 0.0
    %85 = vmatprep.subr.mxu0 0.0
    %86 = vmatpush1.msra.mxu0 0.0
    %87 = vmatprep.subr.mxu0 0.0
    %88 = vmatpush1.msra.mxu0 0.0
    %89 = vmatprep.subr.mxu0 0.0
    %90 = vmatpush1.msra.mxu0 0.0
    %91 = vmatprep.subr.mxu0 0.0
    %92 = vmatpush1.msra.mxu0 0.0
    %93 = vmatprep.subr.mxu0 0.0
    %94 = vmatpush1.msra.mxu0 0.0
    %95 = vmatprep.subr.mxu0 0.0
    %96 = vmatpush1.msra.mxu0 0.0
    %97 = vmatprep.subr.mxu0 0.0
    %98 = vmatpush1.msra.mxu0 0.0
    %99 = vmatprep.subr.mxu0 %v62
    %100 = vmatpush1.msra.mxu0 %v61
    %101 = vmatprep.subr.mxu0 0.0
    %102 = vmatpush2.msra.mxu0 0.0
    %103 = vmatprep.subr.mxu0 0.0
    %104 = vmatpush2.msra.mxu0 0.0
    %105 = vmatprep.subr.mxu0 0.0
    %106 = vmatpush2.msra.mxu0 0.0
    %107 = vmatprep.subr.mxu0 0.0
    %108 = vmatpush2.msra.mxu0 0.0
    %109 = vmatprep.subr.mxu0 0.0
    %110 = vmatpush2.msra.mxu0 0.0
    %111 = vmatprep.subr.mxu0 0.0
    %112 = vmatpush2.msra.mxu0 0.0
    %113 = vmatprep.subr.mxu0 0.0
    %114 = vmatpush2.msra.mxu0 0.0
    %115 = vmatprep.subr.mxu0 0.0
    %116 = vmatpush2.msra.mxu0 0.0
    %117 = vmatprep.subr.mxu0 0.0
    %118 = vmatpush2.msra.mxu0 0.0
    %119 = vmatprep.subr.mxu0 0.0
    %120 = vmatpush2.msra.mxu0 0.0
    %121 = vmatprep.subr.mxu0 0.0
    %122 = vmatpush2.msra.mxu0 0.0
    %123 = vmatprep.subr.mxu0 0.0
    %124 = vmatpush2.msra.mxu0 0.0
    %125 = vmatprep.subr.mxu0 0.0
    %126 = vmatpush2.msra.mxu0 0.0
    %127 = vmatprep.subr.mxu0 0.0
    %128 = vmatpush2.msra.mxu0 0.0
    %129 = vmatprep.subr.mxu0 0.0
    %130 = vmatpush2.msra.mxu0 0.0
    %131 = vmatprep.subr.mxu0 0.0
    %132 = vmatpush2.msra.mxu0 0.0
    %133 = vmatprep.mubr.f32.mxu0 0.0
    %134 = vmatmul.mubr.f32.gmra.mxu0 %v67
    %v135 = vpop.f32.mrf.mxu0
    %v136 = vadd.f32 0.0, %v135
    %v137 = vpop.f32.mrf.mxu0
    %v138 = vadd.f32 0.0, %v137
    %139 = vdwg.mxu0
    %v140 = vld [vmem:[#allocation6] sm:$0xff]
    %v141 = vld [vmem:[#allocation6 + $0x8] sm:$0xff]
    %v142 = vld [vmem:[#allocation6 + $0x10] sm:$0xff]
    %v143 = vld [vmem:[#allocation6 + $0x18] sm:$0xff]
    %v144 = vld [vmem:[#allocation6 + $0x20] sm:$0xff]
    %v145 = vld [vmem:[#allocation6 + $0x28] sm:$0xff]
    %v146 = vld [vmem:[#allocation6 + $0x30] sm:$0xff]
    %v147 = vld [vmem:[#allocation6 + $0x38] sm:$0xff]
    %v148 = vld [vmem:[#allocation6 + $0x40] sm:$0xff]
    %v149 = vld [vmem:[#allocation6 + $0x48] sm:$0xff]
    %v150 = vld [vmem:[#allocation6 + $0x50] sm:$0xff]
    %v151 = vld [vmem:[#allocation6 + $0x58] sm:$0xff]
    %v152 = vld [vmem:[#allocation6 + $0x60] sm:$0xff]
    %v153 = vld [vmem:[#allocation6 + $0x68] sm:$0xff]
    %v154 = vld [vmem:[#allocation6 + $0x70] sm:$0xff]
    %v155 = vld [vmem:[#allocation6 + $0x78] sm:$0xff]
    %v156 = vld [vmem:[#allocation6 + $0x80] sm:$0xff]
    %v157 = vld [vmem:[#allocation6 + $0x88] sm:$0xff]
    %v158 = vld [vmem:[#allocation6 + $0x90] sm:$0xff]
    %v159 = vld [vmem:[#allocation6 + $0x98] sm:$0xff]
    %v160 = vld [vmem:[#allocation6 + $0xa0] sm:$0xff]
    %v161 = vld [vmem:[#allocation6 + $0xa8] sm:$0xff]
    %v162 = vld [vmem:[#allocation6 + $0xb0] sm:$0xff]
    %v163 = vld [vmem:[#allocation6 + $0xb8] sm:$0xff]
    %v164 = vld [vmem:[#allocation6 + $0xc0] sm:$0xff]
    %v165 = vld [vmem:[#allocation6 + $0xc8] sm:$0xff]
    %v166 = vld [vmem:[#allocation6 + $0xd0] sm:$0xff]
    %v167 = vld [vmem:[#allocation6 + $0xd8] sm:$0xff]
    %v168 = vld [vmem:[#allocation6 + $0xe0] sm:$0xff]
    %v169 = vld [vmem:[#allocation6 + $0xe8] sm:$0xff]
    %v170 = vld [vmem:[#allocation6 + $0xf0] sm:$0xff]
    %v171 = vld [vmem:[#allocation6 + $0xf8] sm:$0xff]
    %v172 = vld [vmem:[#allocation6 + $0x100] sm:$0xff]
    %v173 = vld [vmem:[#allocation6 + $0x108] sm:$0xff]
    %v174 = vld [vmem:[#allocation6 + $0x110] sm:$0xff]
    %v175 = vld [vmem:[#allocation6 + $0x118] sm:$0xff]
    %v176 = vld [vmem:[#allocation6 + $0x120] sm:$0xff]
    %v177 = vld [vmem:[#allocation6 + $0x128] sm:$0xff]
    %v178 = vld [vmem:[#allocation6 + $0x130] sm:$0xff]
    %v179 = vld [vmem:[#allocation6 + $0x138] sm:$0xff]
    %v180 = vld [vmem:[#allocation6 + $0x140] sm:$0xff]
    %v181 = vld [vmem:[#allocation6 + $0x148] sm:$0xff]
    %v182 = vld [vmem:[#allocation6 + $0x150] sm:$0xff]
    %v183 = vld [vmem:[#allocation6 + $0x158] sm:$0xff]
    %v184 = vld [vmem:[#allocation6 + $0x160] sm:$0xff]
    %v185 = vld [vmem:[#allocation6 + $0x168] sm:$0xff]
    %v186 = vld [vmem:[#allocation6 + $0x170] sm:$0xff]
    %v187 = vld [vmem:[#allocation6 + $0x178] sm:$0xff]
    %v188 = vld [vmem:[#allocation6 + $0x180] sm:$0xff]
    %v189 = vld [vmem:[#allocation6 + $0x188] sm:$0xff]
    %v190 = vld [vmem:[#allocation6 + $0x190] sm:$0xff]
    %v191 = vld [vmem:[#allocation6 + $0x198] sm:$0xff]
    %v192 = vld [vmem:[#allocation6 + $0x1a0] sm:$0xff]
    %v193 = vld [vmem:[#allocation6 + $0x1a8] sm:$0xff]
    %v194 = vld [vmem:[#allocation6 + $0x1b0] sm:$0xff]
    %v195 = vld [vmem:[#allocation6 + $0x1b8] sm:$0xff]
    %v196 = vld [vmem:[#allocation6 + $0x1c0] sm:$0xff]
    %v197 = vld [vmem:[#allocation6 + $0x1c8] sm:$0xff]
    %v198 = vld [vmem:[#allocation6 + $0x1d0] sm:$0xff]
    %v199 = vld [vmem:[#allocation6 + $0x1d8] sm:$0xff]
    %v200 = vld [vmem:[#allocation6 + $0x1e0] sm:$0xff]
    %v201 = vld [vmem:[#allocation6 + $0x1e8] sm:$0xff]
    %v202 = vld [vmem:[#allocation6 + $0x1f0] sm:$0xff]
    %v203 = vld [vmem:[#allocation6 + $0x1f8] sm:$0xff]
    %v204 = vld [vmem:[#allocation6 + $0x200] sm:$0xff]
    %v205 = vld [vmem:[#allocation6 + $0x208] sm:$0xff]
    %v206 = vld [vmem:[#allocation6 + $0x210] sm:$0xff]
    %v207 = vld [vmem:[#allocation6 + $0x218] sm:$0xff]
    %v208 = vld [vmem:[#allocation6 + $0x220] sm:$0xff]
    %v209 = vld [vmem:[#allocation6 + $0x228] sm:$0xff]
    %v210 = vld [vmem:[#allocation6 + $0x230] sm:$0xff]
    %v211 = vld [vmem:[#allocation6 + $0x238] sm:$0xff]
    %v212 = vld [vmem:[#allocation6 + $0x240] sm:$0xff]
    %v213 = vld [vmem:[#allocation6 + $0x248] sm:$0xff]
    %v214 = vld [vmem:[#allocation6 + $0x250] sm:$0xff]
    %v215 = vld [vmem:[#allocation6 + $0x258] sm:$0xff]
    %v216 = vld [vmem:[#allocation6 + $0x260] sm:$0xff]
    %v217 = vld [vmem:[#allocation6 + $0x268] sm:$0xff]
    %v218 = vld [vmem:[#allocation6 + $0x270] sm:$0xff]
    %v219 = vld [vmem:[#allocation6 + $0x278] sm:$0xff]
    %v220 = vld [vmem:[#allocation6 + $0x280] sm:$0xff]
    %v221 = vld [vmem:[#allocation6 + $0x288] sm:$0xff]
    %v222 = vld [vmem:[#allocation6 + $0x290] sm:$0xff]
    %v223 = vld [vmem:[#allocation6 + $0x298] sm:$0xff]
    %v224 = vld [vmem:[#allocation6 + $0x2a0] sm:$0xff]
    %v225 = vld [vmem:[#allocation6 + $0x2a8] sm:$0xff]
    %v226 = vld [vmem:[#allocation6 + $0x2b0] sm:$0xff]
    %v227 = vld [vmem:[#allocation6 + $0x2b8] sm:$0xff]
    %v228 = vld [vmem:[#allocation6 + $0x2c0] sm:$0xff]
    %v229 = vld [vmem:[#allocation6 + $0x2c8] sm:$0xff]
    %v230 = vld [vmem:[#allocation6 + $0x2d0] sm:$0xff]
    %v231 = vld [vmem:[#allocation6 + $0x2d8] sm:$0xff]
    %v232 = vld [vmem:[#allocation6 + $0x2e0] sm:$0xff]
    %v233 = vld [vmem:[#allocation6 + $0x2e8] sm:$0xff]
    %v234 = vld [vmem:[#allocation6 + $0x2f0] sm:$0xff]
    %v235 = vld [vmem:[#allocation6 + $0x2f8] sm:$0xff]
    %v236 = vld [vmem:[#allocation6 + $0x300] sm:$0xff]
    %v237 = vld [vmem:[#allocation6 + $0x308] sm:$0xff]
    %v238 = vld [vmem:[#allocation6 + $0x310] sm:$0xff]
    %v239 = vld [vmem:[#allocation6 + $0x318] sm:$0xff]
    %v240 = vld [vmem:[#allocation6 + $0x320] sm:$0xff]
    %v241 = vld [vmem:[#allocation6 + $0x328] sm:$0xff]
    %v242 = vld [vmem:[#allocation6 + $0x330] sm:$0xff]
    %v243 = vld [vmem:[#allocation6 + $0x338] sm:$0xff]
    %v244 = vld [vmem:[#allocation6 + $0x340] sm:$0xff]
    %v245 = vld [vmem:[#allocation6 + $0x348] sm:$0xff]
    %v246 = vld [vmem:[#allocation6 + $0x350] sm:$0xff]
    %v247 = vld [vmem:[#allocation6 + $0x358] sm:$0xff]
    %v248 = vld [vmem:[#allocation6 + $0x360] sm:$0xff]
    %v249 = vld [vmem:[#allocation6 + $0x368] sm:$0xff]
    %v250 = vld [vmem:[#allocation6 + $0x370] sm:$0xff]
    %v251 = vld [vmem:[#allocation6 + $0x378] sm:$0xff]
    %v252 = vld [vmem:[#allocation6 + $0x380] sm:$0xff]
    %v253 = vld [vmem:[#allocation6 + $0x388] sm:$0xff]
    %v254 = vld [vmem:[#allocation6 + $0x390] sm:$0xff]
    %v255 = vld [vmem:[#allocation6 + $0x398] sm:$0xff]
    %v256 = vld [vmem:[#allocation6 + $0x3a0] sm:$0xff]
    %v257 = vld [vmem:[#allocation6 + $0x3a8] sm:$0xff]
    %v258 = vld [vmem:[#allocation6 + $0x3b0] sm:$0xff]
    %v259 = vld [vmem:[#allocation6 + $0x3b8] sm:$0xff]
    %v260 = vld [vmem:[#allocation6 + $0x3c0] sm:$0xff]
    %v261 = vld [vmem:[#allocation6 + $0x3c8] sm:$0xff]
    %v262 = vld [vmem:[#allocation6 + $0x3d0] sm:$0xff]
    %v263 = vld [vmem:[#allocation6 + $0x3d8] sm:$0xff]
    %v264 = vld [vmem:[#allocation6 + $0x3e0] sm:$0xff]
    %v265 = vld [vmem:[#allocation6 + $0x3e8] sm:$0xff]
    %v266 = vld [vmem:[#allocation6 + $0x3f0] sm:$0xff]
    %v267 = vld [vmem:[#allocation6 + $0x3f8] sm:$0xff]
    %v268 = vld [vmem:[#allocation6 + $0x400] sm:$0xff]
    %v269 = vld [vmem:[#allocation6 + $0x408] sm:$0xff]
    %v270 = vld [vmem:[#allocation6 + $0x410] sm:$0xff]
    %v271 = vld [vmem:[#allocation6 + $0x418] sm:$0xff]
    %v272 = vld [vmem:[#allocation6 + $0x420] sm:$0xff]
    %v273 = vld [vmem:[#allocation6 + $0x428] sm:$0xff]
    %v274 = vld [vmem:[#allocation6 + $0x430] sm:$0xff]
    %v275 = vld [vmem:[#allocation6 + $0x438] sm:$0xff]
    %v276 = vld [vmem:[#allocation6 + $0x440] sm:$0xff]
    %v277 = vld [vmem:[#allocation6 + $0x448] sm:$0xff]
    %v278 = vld [vmem:[#allocation6 + $0x450] sm:$0xff]
    %v279 = vld [vmem:[#allocation6 + $0x458] sm:$0xff]
    %v280 = vld [vmem:[#allocation6 + $0x460] sm:$0xff]
    %v281 = vld [vmem:[#allocation6 + $0x468] sm:$0xff]
    %v282 = vld [vmem:[#allocation6 + $0x470] sm:$0xff]
    %v283 = vld [vmem:[#allocation6 + $0x478] sm:$0xff]
    %v284 = vld [vmem:[#allocation6 + $0x480] sm:$0xff]
    %v285 = vld [vmem:[#allocation6 + $0x488] sm:$0xff]
    %v286 = vld [vmem:[#allocation6 + $0x490] sm:$0xff]
    %v287 = vld [vmem:[#allocation6 + $0x498] sm:$0xff]
    %v288 = vld [vmem:[#allocation6 + $0x4a0] sm:$0xff]
    %v289 = vld [vmem:[#allocation6 + $0x4a8] sm:$0xff]
    %v290 = vld [vmem:[#allocation6 + $0x4b0] sm:$0xff]
    %v291 = vld [vmem:[#allocation6 + $0x4b8] sm:$0xff]
    %v292 = vld [vmem:[#allocation6 + $0x4c0] sm:$0xff]
    %v293 = vld [vmem:[#allocation6 + $0x4c8] sm:$0xff]
    %v294 = vld [vmem:[#allocation6 + $0x4d0] sm:$0xff]
    %v295 = vld [vmem:[#allocation6 + $0x4d8] sm:$0xff]
    %v296 = vld [vmem:[#allocation6 + $0x4e0] sm:$0xff]
    %v297 = vld [vmem:[#allocation6 + $0x4e8] sm:$0xff]
    %v298 = vld [vmem:[#allocation6 + $0x4f0] sm:$0xff]
    %v299 = vld [vmem:[#allocation6 + $0x4f8] sm:$0xff]
    %v300 = vld [vmem:[#allocation6 + $0x500] sm:$0xff]
    %v301 = vld [vmem:[#allocation6 + $0x508] sm:$0xff]
    %v302 = vld [vmem:[#allocation6 + $0x510] sm:$0xff]
    %v303 = vld [vmem:[#allocation6 + $0x518] sm:$0xff]
    %v304 = vld [vmem:[#allocation6 + $0x520] sm:$0xff]
    %v305 = vld [vmem:[#allocation6 + $0x528] sm:$0xff]
    %v306 = vld [vmem:[#allocation6 + $0x530] sm:$0xff]
    %v307 = vld [vmem:[#allocation6 + $0x538] sm:$0xff]
    %v308 = vld [vmem:[#allocation6 + $0x540] sm:$0xff]
    %v309 = vld [vmem:[#allocation6 + $0x548] sm:$0xff]
    %v310 = vld [vmem:[#allocation6 + $0x550] sm:$0xff]
    %v311 = vld [vmem:[#allocation6 + $0x558] sm:$0xff]
    %v312 = vld [vmem:[#allocation6 + $0x560] sm:$0xff]
    %v313 = vld [vmem:[#allocation6 + $0x568] sm:$0xff]
    %v314 = vld [vmem:[#allocation6 + $0x570] sm:$0xff]
    %v315 = vld [vmem:[#allocation6 + $0x578] sm:$0xff]
    %v316 = vld [vmem:[#allocation6 + $0x580] sm:$0xff]
    %v317 = vld [vmem:[#allocation6 + $0x588] sm:$0xff]
    %v318 = vld [vmem:[#allocation6 + $0x590] sm:$0xff]
    %v319 = vld [vmem:[#allocation6 + $0x598] sm:$0xff]
    %v320 = vld [vmem:[#allocation6 + $0x5a0] sm:$0xff]
    %v321 = vld [vmem:[#allocation6 + $0x5a8] sm:$0xff]
    %v322 = vld [vmem:[#allocation6 + $0x5b0] sm:$0xff]
    %v323 = vld [vmem:[#allocation6 + $0x5b8] sm:$0xff]
    %v324 = vld [vmem:[#allocation6 + $0x5c0] sm:$0xff]
    %v325 = vld [vmem:[#allocation6 + $0x5c8] sm:$0xff]
    %v326 = vld [vmem:[#allocation6 + $0x5d0] sm:$0xff]
    %v327 = vld [vmem:[#allocation6 + $0x5d8] sm:$0xff]
    %v328 = vld [vmem:[#allocation6 + $0x5e0] sm:$0xff]
    %v329 = vld [vmem:[#allocation6 + $0x5e8] sm:$0xff]
    %v330 = vld [vmem:[#allocation6 + $0x5f0] sm:$0xff]
    %v331 = vld [vmem:[#allocation6 + $0x5f8] sm:$0xff]
    %v332 = vld [vmem:[#allocation6 + $0x600] sm:$0xff]
    %v333 = vld [vmem:[#allocation6 + $0x608] sm:$0xff]
    %v334 = vld [vmem:[#allocation6 + $0x610] sm:$0xff]
    %v335 = vld [vmem:[#allocation6 + $0x618] sm:$0xff]
    %v336 = vld [vmem:[#allocation6 + $0x620] sm:$0xff]
    %v337 = vld [vmem:[#allocation6 + $0x628] sm:$0xff]
    %v338 = vld [vmem:[#allocation6 + $0x630] sm:$0xff]
    %v339 = vld [vmem:[#allocation6 + $0x638] sm:$0xff]
    %v340 = vld [vmem:[#allocation6 + $0x640] sm:$0xff]
    %v341 = vld [vmem:[#allocation6 + $0x648] sm:$0xff]
    %v342 = vld [vmem:[#allocation6 + $0x650] sm:$0xff]
    %v343 = vld [vmem:[#allocation6 + $0x658] sm:$0xff]
    %v344 = vld [vmem:[#allocation6 + $0x660] sm:$0xff]
    %v345 = vld [vmem:[#allocation6 + $0x668] sm:$0xff]
    %v346 = vld [vmem:[#allocation6 + $0x670] sm:$0xff]
    %v347 = vld [vmem:[#allocation6 + $0x678] sm:$0xff]
    %v348 = vld [vmem:[#allocation6 + $0x680] sm:$0xff]
    %v349 = vld [vmem:[#allocation6 + $0x688] sm:$0xff]
    %v350 = vld [vmem:[#allocation6 + $0x690] sm:$0xff]
    %v351 = vld [vmem:[#allocation6 + $0x698] sm:$0xff]
    %v352 = vld [vmem:[#allocation6 + $0x6a0] sm:$0xff]
    %v353 = vld [vmem:[#allocation6 + $0x6a8] sm:$0xff]
    %v354 = vld [vmem:[#allocation6 + $0x6b0] sm:$0xff]
    %v355 = vld [vmem:[#allocation6 + $0x6b8] sm:$0xff]
    %v356 = vld [vmem:[#allocation6 + $0x6c0] sm:$0xff]
    %v357 = vld [vmem:[#allocation6 + $0x6c8] sm:$0xff]
    %v358 = vld [vmem:[#allocation6 + $0x6d0] sm:$0xff]
    %v359 = vld [vmem:[#allocation6 + $0x6d8] sm:$0xff]
    %v360 = vld [vmem:[#allocation6 + $0x6e0] sm:$0xff]
    %v361 = vld [vmem:[#allocation6 + $0x6e8] sm:$0xff]
    %v362 = vld [vmem:[#allocation6 + $0x6f0] sm:$0xff]
    %v363 = vld [vmem:[#allocation6 + $0x6f8] sm:$0xff]
    %v364 = vld [vmem:[#allocation6 + $0x700] sm:$0xff]
    %v365 = vld [vmem:[#allocation6 + $0x708] sm:$0xff]
    %v366 = vld [vmem:[#allocation6 + $0x710] sm:$0xff]
    %v367 = vld [vmem:[#allocation6 + $0x718] sm:$0xff]
    %v368 = vld [vmem:[#allocation6 + $0x720] sm:$0xff]
    %v369 = vld [vmem:[#allocation6 + $0x728] sm:$0xff]
    %v370 = vld [vmem:[#allocation6 + $0x730] sm:$0xff]
    %v371 = vld [vmem:[#allocation6 + $0x738] sm:$0xff]
    %v372 = vld [vmem:[#allocation6 + $0x740] sm:$0xff]
    %v373 = vld [vmem:[#allocation6 + $0x748] sm:$0xff]
    %v374 = vld [vmem:[#allocation6 + $0x750] sm:$0xff]
    %v375 = vld [vmem:[#allocation6 + $0x758] sm:$0xff]
    %v376 = vld [vmem:[#allocation6 + $0x760] sm:$0xff]
    %v377 = vld [vmem:[#allocation6 + $0x768] sm:$0xff]
    %v378 = vld [vmem:[#allocation6 + $0x770] sm:$0xff]
    %v379 = vld [vmem:[#allocation6 + $0x778] sm:$0xff]
    %v380 = vld [vmem:[#allocation6 + $0x780] sm:$0xff]
    %v381 = vld [vmem:[#allocation6 + $0x788] sm:$0xff]
    %v382 = vld [vmem:[#allocation6 + $0x790] sm:$0xff]
    %v383 = vld [vmem:[#allocation6 + $0x798] sm:$0xff]
    %v384 = vld [vmem:[#allocation6 + $0x7a0] sm:$0xff]
    %v385 = vld [vmem:[#allocation6 + $0x7a8] sm:$0xff]
    %v386 = vld [vmem:[#allocation6 + $0x7b0] sm:$0xff]
    %v387 = vld [vmem:[#allocation6 + $0x7b8] sm:$0xff]
    %v388 = vld [vmem:[#allocation6 + $0x7c0] sm:$0xff]
    %v389 = vld [vmem:[#allocation6 + $0x7c8] sm:$0xff]
    %v390 = vld [vmem:[#allocation6 + $0x7d0] sm:$0xff]
    %v391 = vld [vmem:[#allocation6 + $0x7d8] sm:$0xff]
    %v392 = vld [vmem:[#allocation6 + $0x7e0] sm:$0xff]
    %v393 = vld [vmem:[#allocation6 + $0x7e8] sm:$0xff]
    %v394 = vld [vmem:[#allocation6 + $0x7f0] sm:$0xff]
    %v395 = vld [vmem:[#allocation6 + $0x7f8] sm:$0xff]
    %396 = vmatprep.subr.mxu0 %v261
    %397 = vmatpush1.msra.mxu0 %v260
    %398 = vmatprep.subr.mxu0 %v253
    %399 = vmatpush1.msra.mxu0 %v252
    %400 = vmatprep.subr.mxu0 %v245
    %401 = vmatpush1.msra.mxu0 %v244
    %402 = vmatprep.subr.mxu0 %v237
    %403 = vmatpush1.msra.mxu0 %v236
    %404 = vmatprep.subr.mxu0 %v229
    %405 = vmatpush1.msra.mxu0 %v228
    %406 = vmatprep.subr.mxu0 %v221
    %407 = vmatpush1.msra.mxu0 %v220
    %408 = vmatprep.subr.mxu0 %v213
    %409 = vmatpush1.msra.mxu0 %v212
    %410 = vmatprep.subr.mxu0 %v205
    %411 = vmatpush1.msra.mxu0 %v204
    %412 = vmatprep.subr.mxu0 %v197
    %413 = vmatpush1.msra.mxu0 %v196
    %414 = vmatprep.subr.mxu0 %v189
    %415 = vmatpush1.msra.mxu0 %v188
    %416 = vmatprep.subr.mxu0 %v181
    %417 = vmatpush1.msra.mxu0 %v180
    %418 = vmatprep.subr.mxu0 %v173
    %419 = vmatpush1.msra.mxu0 %v172
    %420 = vmatprep.subr.mxu0 %v165
    %421 = vmatpush1.msra.mxu0 %v164
    %422 = vmatprep.subr.mxu0 %v157
    %423 = vmatpush1.msra.mxu0 %v156
    %424 = vmatprep.subr.mxu0 %v149
    %425 = vmatpush1.msra.mxu0 %v148
    %426 = vmatprep.subr.mxu0 %v141
    %427 = vmatpush1.msra.mxu0 %v140
    %428 = vmatprep.subr.mxu0 %v389
    %429 = vmatpush2.msra.mxu0 %v388
    %430 = vmatprep.subr.mxu0 %v381
    %431 = vmatpush2.msra.mxu0 %v380
    %432 = vmatprep.subr.mxu0 %v373
    %433 = vmatpush2.msra.mxu0 %v372
    %434 = vmatprep.subr.mxu0 %v365
    %435 = vmatpush2.msra.mxu0 %v364
    %436 = vmatprep.subr.mxu0 %v357
    %437 = vmatpush2.msra.mxu0 %v356
    %438 = vmatprep.subr.mxu0 %v349
    %439 = vmatpush2.msra.mxu0 %v348
    %440 = vmatprep.subr.mxu0 %v341
    %441 = vmatpush2.msra.mxu0 %v340
    %442 = vmatprep.subr.mxu0 %v333
    %443 = vmatpush2.msra.mxu0 %v332
    %444 = vmatprep.subr.mxu0 %v325
    %445 = vmatpush2.msra.mxu0 %v324
    %446 = vmatprep.subr.mxu0 %v317
    %447 = vmatpush2.msra.mxu0 %v316
    %448 = vmatprep.subr.mxu0 %v309
    %449 = vmatpush2.msra.mxu0 %v308
    %450 = vmatprep.subr.mxu0 %v301
    %451 = vmatpush2.msra.mxu0 %v300
    %452 = vmatprep.subr.mxu0 %v293
    %453 = vmatpush2.msra.mxu0 %v292
    %454 = vmatprep.subr.mxu0 %v285
    %455 = vmatpush2.msra.mxu0 %v284
    %456 = vmatprep.subr.mxu0 %v277
    %457 = vmatpush2.msra.mxu0 %v276
    %458 = vmatprep.subr.mxu0 %v269
    %459 = vmatpush2.msra.mxu0 %v268
    %460 = vmatprep.mubr.f32.mxu0 %v138
    %461 = vmatmul.mubr.f32.gmra.mxu0 %v136
    %v462 = vpop.f32.mrf.mxu0
    %v463 = vadd.f32 0.0, %v462
    %v464 = vpop.f32.mrf.mxu0
    %v465 = vadd.f32 0.0, %v464
    %466 = vdwg.mxu0
    %467 = vmatprep.subr.mxu0 %v263
    %468 = vmatpush1.msra.mxu0 %v262
    %469 = vmatprep.subr.mxu0 %v255
    %470 = vmatpush1.msra.mxu0 %v254
    %471 = vmatprep.subr.mxu0 %v247
    %472 = vmatpush1.msra.mxu0 %v246
    %473 = vmatprep.subr.mxu0 %v239
    %474 = vmatpush1.msra.mxu0 %v238
    %475 = vmatprep.subr.mxu0 %v231
    %476 = vmatpush1.msra.mxu0 %v230
    %477 = vmatprep.subr.mxu0 %v223
    %478 = vmatpush1.msra.mxu0 %v222
    %479 = vmatprep.subr.mxu0 %v215
    %480 = vmatpush1.msra.mxu0 %v214
    %481 = vmatprep.subr.mxu0 %v207
    %482 = vmatpush1.msra.mxu0 %v206
    %483 = vmatprep.subr.mxu0 %v199
    %484 = vmatpush1.msra.mxu0 %v198
    %485 = vmatprep.subr.mxu0 %v191
    %486 = vmatpush1.msra.mxu0 %v190
    %487 = vmatprep.subr.mxu0 %v183
    %488 = vmatpush1.msra.mxu0 %v182
    %489 = vmatprep.subr.mxu0 %v175
    %490 = vmatpush1.msra.mxu0 %v174
    %491 = vmatprep.subr.mxu0 %v167
    %492 = vmatpush1.msra.mxu0 %v166
    %493 = vmatprep.subr.mxu0 %v159
    %494 = vmatpush1.msra.mxu0 %v158
    %495 = vmatprep.subr.mxu0 %v151
    %496 = vmatpush1.msra.mxu0 %v150
    %497 = vmatprep.subr.mxu0 %v143
    %498 = vmatpush1.msra.mxu0 %v142
    %499 = vmatprep.subr.mxu0 %v391
    %500 = vmatpush2.msra.mxu0 %v390
    %501 = vmatprep.subr.mxu0 %v383
    %502 = vmatpush2.msra.mxu0 %v382
    %503 = vmatprep.subr.mxu0 %v375
    %504 = vmatpush2.msra.mxu0 %v374
    %505 = vmatprep.subr.mxu0 %v367
    %506 = vmatpush2.msra.mxu0 %v366
    %507 = vmatprep.subr.mxu0 %v359
    %508 = vmatpush2.msra.mxu0 %v358
    %509 = vmatprep.subr.mxu0 %v351
    %510 = vmatpush2.msra.mxu0 %v350
    %511 = vmatprep.subr.mxu0 %v343
    %512 = vmatpush2.msra.mxu0 %v342
    %513 = vmatprep.subr.mxu0 %v335
    %514 = vmatpush2.msra.mxu0 %v334
    %515 = vmatprep.subr.mxu0 %v327
    %516 = vmatpush2.msra.mxu0 %v326
    %517 = vmatprep.subr.mxu0 %v319
    %518 = vmatpush2.msra.mxu0 %v318
    %519 = vmatprep.subr.mxu0 %v311
    %520 = vmatpush2.msra.mxu0 %v310
    %521 = vmatprep.subr.mxu0 %v303
    %522 = vmatpush2.msra.mxu0 %v302
    %523 = vmatprep.subr.mxu0 %v295
    %524 = vmatpush2.msra.mxu0 %v294
    %525 = vmatprep.subr.mxu0 %v287
    %526 = vmatpush2.msra.mxu0 %v286
    %527 = vmatprep.subr.mxu0 %v279
    %528 = vmatpush2.msra.mxu0 %v278
    %529 = vmatprep.subr.mxu0 %v271
    %530 = vmatpush2.msra.mxu0 %v270
    %531 = vmatprep.mubr.f32.mxu0 %v138
    %532 = vmatmul.mubr.f32.gmra.mxu0 %v136
    %v533 = vpop.f32.mrf.mxu0
    %v534 = vadd.f32 0.0, %v533
    %v535 = vpop.f32.mrf.mxu0
    %v536 = vadd.f32 0.0, %v535
    %537 = vdwg.mxu0
    %538 = vmatprep.subr.mxu0 %v265
    %539 = vmatpush1.msra.mxu0 %v264
    %540 = vmatprep.subr.mxu0 %v257
    %541 = vmatpush1.msra.mxu0 %v256
    %542 = vmatprep.subr.mxu0 %v249
    %543 = vmatpush1.msra.mxu0 %v248
    %544 = vmatprep.subr.mxu0 %v241
    %545 = vmatpush1.msra.mxu0 %v240
    %546 = vmatprep.subr.mxu0 %v233
    %547 = vmatpush1.msra.mxu0 %v232
    %548 = vmatprep.subr.mxu0 %v225
    %549 = vmatpush1.msra.mxu0 %v224
    %550 = vmatprep.subr.mxu0 %v217
    %551 = vmatpush1.msra.mxu0 %v216
    %552 = vmatprep.subr.mxu0 %v209
    %553 = vmatpush1.msra.mxu0 %v208
    %554 = vmatprep.subr.mxu0 %v201
    %555 = vmatpush1.msra.mxu0 %v200
    %556 = vmatprep.subr.mxu0 %v193
    %557 = vmatpush1.msra.mxu0 %v192
    %558 = vmatprep.subr.mxu0 %v185
    %559 = vmatpush1.msra.mxu0 %v184
    %560 = vmatprep.subr.mxu0 %v177
    %561 = vmatpush1.msra.mxu0 %v176
    %562 = vmatprep.subr.mxu0 %v169
    %563 = vmatpush1.msra.mxu0 %v168
    %564 = vmatprep.subr.mxu0 %v161
    %565 = vmatpush1.msra.mxu0 %v160
    %566 = vmatprep.subr.mxu0 %v153
    %567 = vmatpush1.msra.mxu0 %v152
    %568 = vmatprep.subr.mxu0 %v145
    %569 = vmatpush1.msra.mxu0 %v144
    %570 = vmatprep.subr.mxu0 %v393
    %571 = vmatpush2.msra.mxu0 %v392
    %572 = vmatprep.subr.mxu0 %v385
    %573 = vmatpush2.msra.mxu0 %v384
    %574 = vmatprep.subr.mxu0 %v377
    %575 = vmatpush2.msra.mxu0 %v376
    %576 = vmatprep.subr.mxu0 %v369
    %577 = vmatpush2.msra.mxu0 %v368
    %578 = vmatprep.subr.mxu0 %v361
    %579 = vmatpush2.msra.mxu0 %v360
    %580 = vmatprep.subr.mxu0 %v353
    %581 = vmatpush2.msra.mxu0 %v352
    %582 = vmatprep.subr.mxu0 %v345
    %583 = vmatpush2.msra.mxu0 %v344
    %584 = vmatprep.subr.mxu0 %v337
    %585 = vmatpush2.msra.mxu0 %v336
    %586 = vmatprep.subr.mxu0 %v329
    %587 = vmatpush2.msra.mxu0 %v328
    %588 = vmatprep.subr.mxu0 %v321
    %589 = vmatpush2.msra.mxu0 %v320
    %590 = vmatprep.subr.mxu0 %v313
    %591 = vmatpush2.msra.mxu0 %v312
    %592 = vmatprep.subr.mxu0 %v305
    %593 = vmatpush2.msra.mxu0 %v304
    %594 = vmatprep.subr.mxu0 %v297
    %595 = vmatpush2.msra.mxu0 %v296
    %596 = vmatprep.subr.mxu0 %v289
    %597 = vmatpush2.msra.mxu0 %v288
    %598 = vmatprep.subr.mxu0 %v281
    %599 = vmatpush2.msra.mxu0 %v280
    %600 = vmatprep.subr.mxu0 %v273
    %601 = vmatpush2.msra.mxu0 %v272
    %602 = vmatprep.mubr.f32.mxu0 %v138
    %603 = vmatmul.mubr.f32.gmra.mxu0 %v136
    %v604 = vpop.f32.mrf.mxu0
    %v605 = vadd.f32 0.0, %v604
    %v606 = vpop.f32.mrf.mxu0
    %v607 = vadd.f32 0.0, %v606
    %608 = vdwg.mxu0
    %609 = vmatprep.subr.mxu0 %v267
    %610 = vmatpush1.msra.mxu0 %v266
    %611 = vmatprep.subr.mxu0 %v259
    %612 = vmatpush1.msra.mxu0 %v258
    %613 = vmatprep.subr.mxu0 %v251
    %614 = vmatpush1.msra.mxu0 %v250
    %615 = vmatprep.subr.mxu0 %v243
    %616 = vmatpush1.msra.mxu0 %v242
    %617 = vmatprep.subr.mxu0 %v235
    %618 = vmatpush1.msra.mxu0 %v234
    %619 = vmatprep.subr.mxu0 %v227
    %620 = vmatpush1.msra.mxu0 %v226
    %621 = vmatprep.subr.mxu0 %v219
    %622 = vmatpush1.msra.mxu0 %v218
    %623 = vmatprep.subr.mxu0 %v211
    %624 = vmatpush1.msra.mxu0 %v210
    %625 = vmatprep.subr.mxu0 %v203
    %626 = vmatpush1.msra.mxu0 %v202
    %627 = vmatprep.subr.mxu0 %v195
    %628 = vmatpush1.msra.mxu0 %v194
    %629 = vmatprep.subr.mxu0 %v187
    %630 = vmatpush1.msra.mxu0 %v186
    %631 = vmatprep.subr.mxu0 %v179
    %632 = vmatpush1.msra.mxu0 %v178
    %633 = vmatprep.subr.mxu0 %v171
    %634 = vmatpush1.msra.mxu0 %v170
    %635 = vmatprep.subr.mxu0 %v163
    %636 = vmatpush1.msra.mxu0 %v162
    %637 = vmatprep.subr.mxu0 %v155
    %638 = vmatpush1.msra.mxu0 %v154
    %639 = vmatprep.subr.mxu0 %v147
    %640 = vmatpush1.msra.mxu0 %v146
    %641 = vmatprep.subr.mxu0 %v395
    %642 = vmatpush2.msra.mxu0 %v394
    %643 = vmatprep.subr.mxu0 %v387
    %644 = vmatpush2.msra.mxu0 %v386
    %645 = vmatprep.subr.mxu0 %v379
    %646 = vmatpush2.msra.mxu0 %v378
    %647 = vmatprep.subr.mxu0 %v371
    %648 = vmatpush2.msra.mxu0 %v370
    %649 = vmatprep.subr.mxu0 %v363
    %650 = vmatpush2.msra.mxu0 %v362
    %651 = vmatprep.subr.mxu0 %v355
    %652 = vmatpush2.msra.mxu0 %v354
    %653 = vmatprep.subr.mxu0 %v347
    %654 = vmatpush2.msra.mxu0 %v346
    %655 = vmatprep.subr.mxu0 %v339
    %656 = vmatpush2.msra.mxu0 %v338
    %657 = vmatprep.subr.mxu0 %v331
    %658 = vmatpush2.msra.mxu0 %v330
    %659 = vmatprep.subr.mxu0 %v323
    %660 = vmatpush2.msra.mxu0 %v322
    %661 = vmatprep.subr.mxu0 %v315
    %662 = vmatpush2.msra.mxu0 %v314
    %663 = vmatprep.subr.mxu0 %v307
    %664 = vmatpush2.msra.mxu0 %v306
    %665 = vmatprep.subr.mxu0 %v299
    %666 = vmatpush2.msra.mxu0 %v298
    %667 = vmatprep.subr.mxu0 %v291
    %668 = vmatpush2.msra.mxu0 %v290
    %669 = vmatprep.subr.mxu0 %v283
    %670 = vmatpush2.msra.mxu0 %v282
    %671 = vmatprep.subr.mxu0 %v275
    %672 = vmatpush2.msra.mxu0 %v274
    %673 = vmatprep.mubr.f32.mxu0 %v138
    %674 = vmatmul.mubr.f32.gmra.mxu0 %v136
    %v675 = vpop.f32.mrf.mxu0
    %v676 = vadd.f32 0.0, %v675
    %v677 = vpop.f32.mrf.mxu0
    %v678 = vadd.f32 0.0, %v677
    %679 = vdwg.mxu0
    %v688 = vcombine.low %v463, %v465
    %v689 = vcombine.high %v463, %v465
    %v690 = vcombine.low %v534, %v536
    %v691 = vcombine.high %v534, %v536
    %v692 = vcombine.low %v605, %v607
    %v693 = vcombine.high %v605, %v607
    %v694 = vcombine.low %v676, %v678
    %v695 = vcombine.high %v676, %v678
    %v697 = vunpack.c.l.s4 1966171168
    %v698 = vunpack.c.0.s8 %v697
    %v699 = vlaneseq
    %v700 = vshrl.u32 %v699, 7
    %v701 = vsub.s32 %v698, %v700
    %v702 = vrot.slane %v688, %v701
    %v704 = vunpack.c.l.s4 1966171168
    %v705 = vunpack.c.0.s8 %v704
    %v706 = vlaneseq
    %v707 = vshrl.u32 %v706, 7
    %v708 = vsub.s32 %v705, %v707
    %v709 = vrot.slane %v689, %v708
    %v711 = vunpack.c.l.s4 1966171168
    %v712 = vunpack.c.0.s8 %v711
    %v713 = vlaneseq
    %v714 = vshrl.u32 %v713, 7
    %v715 = vsub.s32 %v712, %v714
    %v716 = vrot.slane %v690, %v715
    %v718 = vunpack.c.l.s4 1966171168
    %v719 = vunpack.c.0.s8 %v718
    %v720 = vlaneseq
    %v721 = vshrl.u32 %v720, 7
    %v722 = vsub.s32 %v719, %v721
    %v723 = vrot.slane %v691, %v722
    %v725 = vunpack.c.l.s4 1966171168
    %v726 = vunpack.c.0.s8 %v725
    %v727 = vlaneseq
    %v728 = vshrl.u32 %v727, 7
    %v729 = vsub.s32 %v726, %v728
    %v730 = vrot.slane %v692, %v729
    %v732 = vunpack.c.l.s4 1966171168
    %v733 = vunpack.c.0.s8 %v732
    %v734 = vlaneseq
    %v735 = vshrl.u32 %v734, 7
    %v736 = vsub.s32 %v733, %v735
    %v737 = vrot.slane %v693, %v736
    %v739 = vunpack.c.l.s4 1966171168
    %v740 = vunpack.c.0.s8 %v739
    %v741 = vlaneseq
    %v742 = vshrl.u32 %v741, 7
    %v743 = vsub.s32 %v740, %v742
    %v744 = vrot.slane %v694, %v743
    %v746 = vunpack.c.l.s4 1966171168
    %v747 = vunpack.c.0.s8 %v746
    %v748 = vlaneseq
    %v749 = vshrl.u32 %v748, 7
    %v750 = vsub.s32 %v747, %v749
    %v751 = vrot.slane %v695, %v750
    %v752 = vcombine.low %v702, %v716
    %v753 = vcombine.high %v702, %v716
    %v754 = vcombine.low %v709, %v723
    %v755 = vcombine.high %v709, %v723
    %v756 = vcombine.low %v730, %v744
    %v757 = vcombine.high %v730, %v744
    %v758 = vcombine.low %v737, %v751
    %v759 = vcombine.high %v737, %v751
    %v761 = vunpack.c.l.s4 1966171168
    %v762 = vunpack.c.0.s8 %v761
    %v763 = vlaneseq
    %v764 = vshrl.u32 %v763, 7
    %v765 = vsub.s32 %v762, %v764
    %v766 = vrot.slane %v752, %v765
    %v768 = vunpack.c.l.s4 1966171168
    %v769 = vunpack.c.0.s8 %v768
    %v770 = vlaneseq
    %v771 = vshrl.u32 %v770, 7
    %v772 = vsub.s32 %v769, %v771
    %v773 = vrot.slane %v754, %v772
    %v775 = vunpack.c.l.s4 1966171168
    %v776 = vunpack.c.0.s8 %v775
    %v777 = vlaneseq
    %v778 = vshrl.u32 %v777, 7
    %v779 = vsub.s32 %v776, %v778
    %v780 = vrot.slane %v753, %v779
    %v782 = vunpack.c.l.s4 1966171168
    %v783 = vunpack.c.0.s8 %v782
    %v784 = vlaneseq
    %v785 = vshrl.u32 %v784, 7
    %v786 = vsub.s32 %v783, %v785
    %v787 = vrot.slane %v755, %v786
    %v789 = vunpack.c.l.s4 1966171168
    %v790 = vunpack.c.0.s8 %v789
    %v791 = vlaneseq
    %v792 = vshrl.u32 %v791, 7
    %v793 = vsub.s32 %v790, %v792
    %v794 = vrot.slane %v756, %v793
    %v796 = vunpack.c.l.s4 1966171168
    %v797 = vunpack.c.0.s8 %v796
    %v798 = vlaneseq
    %v799 = vshrl.u32 %v798, 7
    %v800 = vsub.s32 %v797, %v799
    %v801 = vrot.slane %v758, %v800
    %v803 = vunpack.c.l.s4 1966171168
    %v804 = vunpack.c.0.s8 %v803
    %v805 = vlaneseq
    %v806 = vshrl.u32 %v805, 7
    %v807 = vsub.s32 %v804, %v806
    %v808 = vrot.slane %v757, %v807
    %v810 = vunpack.c.l.s4 1966171168
    %v811 = vunpack.c.0.s8 %v810
    %v812 = vlaneseq
    %v813 = vshrl.u32 %v812, 7
    %v814 = vsub.s32 %v811, %v813
    %v815 = vrot.slane %v759, %v814
    %v816 = vcombine.low %v766, %v794
    %v817 = vcombine.high %v766, %v794
    %v818 = vcombine.low %v773, %v801
    %v819 = vcombine.low %v780, %v808
    %v820 = vcombine.high %v780, %v808
    %v821 = vcombine.low %v787, %v815
    %v828 = vld [vmem:[%s3] sm:$0x7]
    %830 = vset.pattern.permute.xlu0 0
    %831 = vperm.xlu0 %830, %v828
    %v832 = vpop.permute.xlu0 %831
    %v833 = vlaneseq
    %v834 = vshrl.u32 %v833, 7
    %v835 = vsub.s32 0, %v834
    %v836 = vrot.slane %v832, %v835
    %v837 = vlaneseq
    %v838 = vshrl.u32 %v837, 7
    %v839 = vsub.s32 1, %v838
    %v840 = vrot.slane %v832, %v839
    %v841 = vlaneseq
    %v842 = vshrl.u32 %v841, 7
    %v843 = vsub.s32 2, %v842
    %v844 = vrot.slane %v832, %v843
    %v848 = vadd.f32 %v816, %v836
    %v849 = vadd.f32 %v819, %v840
    %v850 = vadd.f32 %v817, %v844
    %v851 = vadd.f32 %v820, %v836
    %v852 = vadd.f32 %v818, %v840
    %v853 = vadd.f32 %v821, %v844
    %v860 = vcombine.low %v848, %v850
    %v861 = vcombine.high %v848, %v850
    %v862 = vcombine.high %v849, %v849
    %v864 = vunpack.c.l.s4 1935823168
    %v865 = vunpack.c.0.s8 %v864
    %v866 = vlaneseq
    %v867 = vshrl.u32 %v866, 7
    %v868 = vsub.s32 %v865, %v867
    %v869 = vrot.slane %v860, %v868
    %v871 = vunpack.c.l.s4 1935823168
    %v872 = vunpack.c.0.s8 %v871
    %v873 = vlaneseq
    %v874 = vshrl.u32 %v873, 7
    %v875 = vsub.s32 %v872, %v874
    %v876 = vrot.slane %v849, %v875
    %v878 = vunpack.c.l.s4 1935823168
    %v879 = vunpack.c.0.s8 %v878
    %v880 = vlaneseq
    %v881 = vshrl.u32 %v880, 7
    %v882 = vsub.s32 %v879, %v881
    %v883 = vrot.slane %v861, %v882
    %v885 = vunpack.c.l.s4 1935823168
    %v886 = vunpack.c.0.s8 %v885
    %v887 = vlaneseq
    %v888 = vshrl.u32 %v887, 7
    %v889 = vsub.s32 %v886, %v888
    %v890 = vrot.slane %v862, %v889
    %v891 = vcombine.low %v869, %v876
    %v892 = vcombine.high %v869, %v876
    %v893 = vcombine.low %v883, %v890
    %v894 = vcombine.high %v883, %v890
    %v896 = vunpack.c.l.s4 1935823168
    %v897 = vunpack.c.0.s8 %v896
    %v898 = vlaneseq
    %v899 = vshrl.u32 %v898, 7
    %v900 = vsub.s32 %v897, %v899
    %v901 = vrot.slane %v891, %v900
    %v903 = vunpack.c.l.s4 1935823168
    %v904 = vunpack.c.0.s8 %v903
    %v905 = vlaneseq
    %v906 = vshrl.u32 %v905, 7
    %v907 = vsub.s32 %v904, %v906
    %v908 = vrot.slane %v892, %v907
    %v910 = vunpack.c.l.s4 1935823168
    %v911 = vunpack.c.0.s8 %v910
    %v912 = vlaneseq
    %v913 = vshrl.u32 %v912, 7
    %v914 = vsub.s32 %v911, %v913
    %v915 = vrot.slane %v893, %v914
    %v917 = vunpack.c.l.s4 1935823168
    %v918 = vunpack.c.0.s8 %v917
    %v919 = vlaneseq
    %v920 = vshrl.u32 %v919, 7
    %v921 = vsub.s32 %v918, %v920
    %v922 = vrot.slane %v894, %v921
    %v923 = vcombine.low %v851, %v853
    %v924 = vcombine.high %v851, %v853
    %v925 = vcombine.high %v852, %v852
    %v927 = vunpack.c.l.s4 1935823168
    %v928 = vunpack.c.0.s8 %v927
    %v929 = vlaneseq
    %v930 = vshrl.u32 %v929, 7
    %v931 = vsub.s32 %v928, %v930
    %v932 = vrot.slane %v923, %v931
    %v934 = vunpack.c.l.s4 1935823168
    %v935 = vunpack.c.0.s8 %v934
    %v936 = vlaneseq
    %v937 = vshrl.u32 %v936, 7
    %v938 = vsub.s32 %v935, %v937
    %v939 = vrot.slane %v852, %v938
    %v941 = vunpack.c.l.s4 1935823168
    %v942 = vunpack.c.0.s8 %v941
    %v943 = vlaneseq
    %v944 = vshrl.u32 %v943, 7
    %v945 = vsub.s32 %v942, %v944
    %v946 = vrot.slane %v924, %v945
    %v948 = vunpack.c.l.s4 1935823168
    %v949 = vunpack.c.0.s8 %v948
    %v950 = vlaneseq
    %v951 = vshrl.u32 %v950, 7
    %v952 = vsub.s32 %v949, %v951
    %v953 = vrot.slane %v925, %v952
    %v954 = vcombine.low %v932, %v939
    %v955 = vcombine.high %v932, %v939
    %v956 = vcombine.low %v946, %v953
    %v957 = vcombine.high %v946, %v953
    %v959 = vunpack.c.l.s4 1935823168
    %v960 = vunpack.c.0.s8 %v959
    %v961 = vlaneseq
    %v962 = vshrl.u32 %v961, 7
    %v963 = vsub.s32 %v960, %v962
    %v964 = vrot.slane %v954, %v963
    %v966 = vunpack.c.l.s4 1935823168
    %v967 = vunpack.c.0.s8 %v966
    %v968 = vlaneseq
    %v969 = vshrl.u32 %v968, 7
    %v970 = vsub.s32 %v967, %v969
    %v971 = vrot.slane %v955, %v970
    %v973 = vunpack.c.l.s4 1935823168
    %v974 = vunpack.c.0.s8 %v973
    %v975 = vlaneseq
    %v976 = vshrl.u32 %v975, 7
    %v977 = vsub.s32 %v974, %v976
    %v978 = vrot.slane %v956, %v977
    %v980 = vunpack.c.l.s4 1935823168
    %v981 = vunpack.c.0.s8 %v980
    %v982 = vlaneseq
    %v983 = vshrl.u32 %v982, 7
    %v984 = vsub.s32 %v981, %v983
    %v985 = vrot.slane %v957, %v984
    %994 = vst [vmem:[%s4] sm:$0x77] %v901
    %995 = vst [vmem:[%s4 + $0x8] sm:$0x77] %v908
    %996 = vst [vmem:[%s4 + $0x10] sm:$0x77] %v915
    %997 = vst [vmem:[%s4 + $0x18] sm:$0x77] %v922
    %998 = vst [vmem:[%s4 + $0x20] sm:$0x77] %v964
    %999 = vst [vmem:[%s4 + $0x28] sm:$0x77] %v971
    %1000 = vst [vmem:[%s4 + $0x30] sm:$0x77] %v978
    %1001 = vst [vmem:[%s4 + $0x38] sm:$0x77] %v985
    // Predicated region
    $region30: #{tpu_custom_call.1} parent=1 // pred_check
      _
    $region31: #{tpu_custom_call.1} parent=1 // pred_check_branch
      %1003 = sbr.rel (0) target = $region33
    $region32: #{tpu_custom_call.1} parent=1 // pred_region
      _
    $region33: #{tpu_custom_call.1} parent=1 // pred_fallthru
      _
    // Predicated region
    $region34: #{tpu_custom_call.1} parent=1 // pred_check
      _
    $region35: #{tpu_custom_call.1} parent=1 // pred_check_branch
      %1005 = sbr.rel (0) target = $region37
    $region36: #{tpu_custom_call.1} parent=1 // pred_region
      _
    $region37: #{tpu_custom_call.1} parent=1 // pred_fallthru
      _
    %1006 = vsyncpa [#allocation3], 1
    %1007 = vsyncpa [#allocation5], 1

</llo_original>
